<compile_context>
chip_gen: v5e
topology: v5e:2x2
jax: 0.10.0
libtpu: 0.0.40
codegen_flags: <defaults>
</compile_context>

<pallas_src>
import jax
import jax.numpy as jnp
from jax.experimental import pallas as pl
from jax.experimental.pallas import tpu as pltpu


def _mlp_kernel(x_ref,
                w0_ref, b0_ref,
                w1_ref, b1_ref,
                w2_ref, b2_ref,
                w3_ref, b3_ref,
                o_ref):
    # Fused 4-layer MLP, feature-major: h is (features, tile_b) — lane dense.
    h = x_ref[...]                                                   # bf16 (cs, tb)
    h = jnp.dot(w0_ref[...], h, preferred_element_type=jnp.float32) + b0_ref[...]
    h = jnp.maximum(h, 0.0).astype(jnp.bfloat16)
    h = jnp.dot(w1_ref[...], h, preferred_element_type=jnp.float32) + b1_ref[...]
    h = jnp.maximum(h, 0.0).astype(jnp.bfloat16)
    h = jnp.dot(w2_ref[...], h, preferred_element_type=jnp.float32) + b2_ref[...]
    h = jnp.maximum(h, 0.0).astype(jnp.bfloat16)
    out = jnp.dot(w3_ref[...], h, preferred_element_type=jnp.float32) + b3_ref[...]
    o_ref[...] = out.astype(o_ref.dtype)                             # (n_out, tb) f32


def symbolic_net_forward(x, params, *, tile_b=128):
    """x: (B, code_size) float32.
    params: W0..W3 stored (out, in) bf16; b0..b3 stored (out, 1) f32.
    Returns (B, n_outputs) float32."""
    B, code_size = x.shape
    n_out = params["W3"].shape[0]

    # Pad batch to a multiple of the (lane-dense) batch tile.
    tile_b = max(8, tile_b)
    B_pad = ((B + tile_b - 1) // tile_b) * tile_b
    x_t = jnp.transpose(x).astype(jnp.bfloat16)          # (code_size, B), feature-major
    if B_pad != B:
        x_t = jnp.pad(x_t, ((0, 0), (0, B_pad - B)))

    grid = (B_pad // tile_b,)

    def batch_map(i):
        return (0, i)

    def const_map(i):
        return (0, 0)

    in_specs = [pl.BlockSpec((code_size, tile_b), batch_map)]
    args = [x_t]
    for k in range(4):
        w = params[f"W{k}"]
        b = params[f"b{k}"]
        in_specs.append(pl.BlockSpec(w.shape, const_map))   # grid-invariant weights
        in_specs.append(pl.BlockSpec(b.shape, const_map))   # grid-invariant biases
        args.append(w)
        args.append(b)

    out_spec = pl.BlockSpec((n_out, tile_b), batch_map)

    # Advisory cost estimate for XLA scheduling around the custom call.
    flops = 0
    bytes_accessed = B_pad * code_size * 2 + n_out * B_pad * 4
    for k in range(4):
        w = params[f"W{k}"]
        b = params[f"b{k}"]
        flops += 2 * B_pad * w.shape[0] * w.shape[1]
        bytes_accessed += w.shape[0] * w.shape[1] * 2 + b.shape[0] * 4

    fn = pl.pallas_call(
        _mlp_kernel,
        out_shape=jax.ShapeDtypeStruct((n_out, B_pad), jnp.float32),
        grid_spec=pl.GridSpec(
            grid=grid,
            in_specs=in_specs,
            out_specs=out_spec,
        ),
        compiler_params=pltpu.CompilerParams(
            dimension_semantics=("parallel",)),
        cost_estimate=pl.CostEstimate(
            flops=flops, transcendentals=0, bytes_accessed=bytes_accessed),
    )
    out_t = fn(*args)                       # (n_out, B_pad) f32, lane-dense blocks
    return jnp.transpose(out_t[:, :B])      # (B, n_out)


def init_params(key, code_size, n_hidden, n_outputs, bias=True):
    """Matches the PyTorch module's layer shapes.
    nn.Linear(in, out) default init: U(-1/sqrt(in), 1/sqrt(in)).
    Weights stored (out, in) in bf16 (MXU inputs); biases (out, 1) in f32."""
    dims = [
        (code_size, n_hidden),
        (n_hidden, n_hidden // 2),
        (n_hidden // 2, n_hidden // 4),
        (n_hidden // 4, n_outputs),
    ]
    params = {}
    for i, (fin, fout) in enumerate(dims):
        key, kw, kb = jax.random.split(key, 3)
        bound = 1.0 / jnp.sqrt(fin)
        w = jax.random.uniform(kw, (fout, fin), jnp.float32, -bound, bound)
        params[f"W{i}"] = w.astype(jnp.bfloat16)
        if bias:
            b = jax.random.uniform(kb, (fout, 1), jnp.float32, -bound, bound)
        else:
            b = jnp.zeros((fout, 1), jnp.float32)
        params[f"b{i}"] = b
    return params


def reference_forward(x, params):
    """Pure-JAX reference mirroring the kernel numerics (bf16 operands, f32 acc)."""
    h = x.astype(jnp.bfloat16).astype(jnp.float32)          # (B, cs)
    for i in range(4):
        w = params[f"W{i}"].astype(jnp.float32)             # (out, in)
        b = params[f"b{i}"]                                  # (out, 1)
        y = h @ w.T + b.T
        if i < 3:
            h = jnp.maximum(y, 0.0).astype(jnp.bfloat16).astype(jnp.float32)
        else:
            h = y
    return h


if __name__ == "__main__":
    # Shapes consistent with the module:
    #   code_size=32, n_hidden_nodes=32 (hidden dims 32 -> 16 -> 8), n_outputs=4.
    # Batch 256 with tile_b=128 gives a lane-dense batch tile and 2 parallel
    # grid steps (uses both TensorCores on v7x).
    CODE_SIZE = 32
    N_HIDDEN = 32
    N_OUTPUTS = 4
    BATCH = 256

    key = jax.random.PRNGKey(0)
    key, kx = jax.random.split(key)
    x = jax.random.normal(kx, (BATCH, CODE_SIZE), jnp.float32)

    params = init_params(key, CODE_SIZE, N_HIDDEN, N_OUTPUTS, bias=True)

    out = symbolic_net_forward(x, params, tile_b=128)
    out = jax.block_until_ready(out)

    ref = reference_forward(x, params)
    assert out.shape == (BATCH, N_OUTPUTS), out.shape
    assert jnp.allclose(out, ref, atol=1e-2, rtol=1e-2), "mismatch vs JAX reference"

    print("KERNEL_OK")
</pallas_src>

<mosaic_0001>
module attributes {stable_mosaic.version = 11 : i64} {
  func.func @_mlp_kernel(%arg0: i32, %arg1: memref<32x128xbf16, #tpu.memory_space<vmem>>, %arg2: memref<32x32xbf16, #tpu.memory_space<vmem>>, %arg3: memref<32x1xf32, #tpu.memory_space<vmem>>, %arg4: memref<16x32xbf16, #tpu.memory_space<vmem>>, %arg5: memref<16x1xf32, #tpu.memory_space<vmem>>, %arg6: memref<8x16xbf16, #tpu.memory_space<vmem>>, %arg7: memref<8x1xf32, #tpu.memory_space<vmem>>, %arg8: memref<4x8xbf16, #tpu.memory_space<vmem>>, %arg9: memref<4x1xf32, #tpu.memory_space<vmem>>, %arg10: memref<4x128xf32, #tpu.memory_space<vmem>>) attributes {dimension_semantics = [#tpu.dimension_semantics<parallel>], iteration_bounds = array<i64: 2>, scalar_prefetch = 0 : i64, scratch_operands = 0 : i64, tpu.core_type = #tpu.core_type<tc>, window_params = [{transform_indices = @transform_0, window_bounds = array<i64: 32, 128>}, {pipeline_mode = #tpu.pipeline_mode<synchronous>, transform_indices = @transform_1, window_bounds = array<i64: 32, 32>}, {pipeline_mode = #tpu.pipeline_mode<synchronous>, transform_indices = @transform_2, window_bounds = array<i64: 32, 1>}, {pipeline_mode = #tpu.pipeline_mode<synchronous>, transform_indices = @transform_3, window_bounds = array<i64: 16, 32>}, {pipeline_mode = #tpu.pipeline_mode<synchronous>, transform_indices = @transform_4, window_bounds = array<i64: 16, 1>}, {pipeline_mode = #tpu.pipeline_mode<synchronous>, transform_indices = @transform_5, window_bounds = array<i64: 8, 16>}, {pipeline_mode = #tpu.pipeline_mode<synchronous>, transform_indices = @transform_6, window_bounds = array<i64: 8, 1>}, {pipeline_mode = #tpu.pipeline_mode<synchronous>, transform_indices = @transform_7, window_bounds = array<i64: 4, 8>}, {pipeline_mode = #tpu.pipeline_mode<synchronous>, transform_indices = @transform_8, window_bounds = array<i64: 4, 1>}, {transform_indices = @transform_9, window_bounds = array<i64: 4, 128>}]} {
    %c0 = arith.constant 0 : index
    %c0_0 = arith.constant 0 : index
    %0 = vector.load %arg1[%c0, %c0_0] : memref<32x128xbf16, #tpu.memory_space<vmem>>, vector<32x128xbf16>
    %c0_1 = arith.constant 0 : index
    %c0_2 = arith.constant 0 : index
    %1 = vector.load %arg2[%c0_1, %c0_2] : memref<32x32xbf16, #tpu.memory_space<vmem>>, vector<32x32xbf16>
    %cst = arith.constant dense<0.000000e+00> : vector<32x128xf32>
    %2 = tpu.matmul %1, %0, %cst {dimension_numbers = #tpu.dot_dimension_numbers<[1], [0], [0], [1], [0, 0, 1, 1], [], []>} : vector<32x32xbf16>, vector<32x128xbf16>, vector<32x128xf32> -> vector<32x128xf32>
    %c0_3 = arith.constant 0 : index
    %c0_4 = arith.constant 0 : index
    %3 = vector.load %arg3[%c0_3, %c0_4] : memref<32x1xf32, #tpu.memory_space<vmem>>, vector<32x1xf32>
    %4 = vector.broadcast %3 : vector<32x1xf32> to vector<32x128xf32>
    %5 = arith.addf %2, %4 : vector<32x128xf32>
    %cst_5 = arith.constant 0.000000e+00 : f32
    %6 = vector.broadcast %cst_5 : f32 to vector<32x128xf32>
    %7 = arith.maximumf %5, %6 : vector<32x128xf32>
    %8 = arith.truncf %7 : vector<32x128xf32> to vector<32x128xbf16>
    %c0_6 = arith.constant 0 : index
    %c0_7 = arith.constant 0 : index
    %9 = vector.load %arg4[%c0_6, %c0_7] : memref<16x32xbf16, #tpu.memory_space<vmem>>, vector<16x32xbf16>
    %cst_8 = arith.constant dense<0.000000e+00> : vector<16x128xf32>
    %10 = tpu.matmul %9, %8, %cst_8 {dimension_numbers = #tpu.dot_dimension_numbers<[1], [0], [0], [1], [0, 0, 1, 1], [], []>} : vector<16x32xbf16>, vector<32x128xbf16>, vector<16x128xf32> -> vector<16x128xf32>
    %c0_9 = arith.constant 0 : index
    %c0_10 = arith.constant 0 : index
    %11 = vector.load %arg5[%c0_9, %c0_10] : memref<16x1xf32, #tpu.memory_space<vmem>>, vector<16x1xf32>
    %12 = vector.broadcast %11 : vector<16x1xf32> to vector<16x128xf32>
    %13 = arith.addf %10, %12 : vector<16x128xf32>
    %cst_11 = arith.constant 0.000000e+00 : f32
    %14 = vector.broadcast %cst_11 : f32 to vector<16x128xf32>
    %15 = arith.maximumf %13, %14 : vector<16x128xf32>
    %16 = arith.truncf %15 : vector<16x128xf32> to vector<16x128xbf16>
    %c0_12 = arith.constant 0 : index
    %c0_13 = arith.constant 0 : index
    %17 = vector.load %arg6[%c0_12, %c0_13] : memref<8x16xbf16, #tpu.memory_space<vmem>>, vector<8x16xbf16>
    %cst_14 = arith.constant dense<0.000000e+00> : vector<8x128xf32>
    %18 = tpu.matmul %17, %16, %cst_14 {dimension_numbers = #tpu.dot_dimension_numbers<[1], [0], [0], [1], [0, 0, 1, 1], [], []>} : vector<8x16xbf16>, vector<16x128xbf16>, vector<8x128xf32> -> vector<8x128xf32>
    %c0_15 = arith.constant 0 : index
    %c0_16 = arith.constant 0 : index
    %19 = vector.load %arg7[%c0_15, %c0_16] : memref<8x1xf32, #tpu.memory_space<vmem>>, vector<8x1xf32>
    %20 = vector.broadcast %19 : vector<8x1xf32> to vector<8x128xf32>
    %21 = arith.addf %18, %20 : vector<8x128xf32>
    %cst_17 = arith.constant 0.000000e+00 : f32
    %22 = vector.broadcast %cst_17 : f32 to vector<8x128xf32>
    %23 = arith.maximumf %21, %22 : vector<8x128xf32>
    %24 = arith.truncf %23 : vector<8x128xf32> to vector<8x128xbf16>
    %c0_18 = arith.constant 0 : index
    %c0_19 = arith.constant 0 : index
    %25 = vector.load %arg8[%c0_18, %c0_19] : memref<4x8xbf16, #tpu.memory_space<vmem>>, vector<4x8xbf16>
    %cst_20 = arith.constant dense<0.000000e+00> : vector<4x128xf32>
    %26 = tpu.matmul %25, %24, %cst_20 {dimension_numbers = #tpu.dot_dimension_numbers<[1], [0], [0], [1], [0, 0, 1, 1], [], []>} : vector<4x8xbf16>, vector<8x128xbf16>, vector<4x128xf32> -> vector<4x128xf32>
    %c0_21 = arith.constant 0 : index
    %c0_22 = arith.constant 0 : index
    %27 = vector.load %arg9[%c0_21, %c0_22] : memref<4x1xf32, #tpu.memory_space<vmem>>, vector<4x1xf32>
    %28 = vector.broadcast %27 : vector<4x1xf32> to vector<4x128xf32>
    %29 = arith.addf %26, %28 : vector<4x128xf32>
    %c0_23 = arith.constant 0 : index
    %c0_24 = arith.constant 0 : index
    %30 = vector.load %arg10[%c0_23, %c0_24] : memref<4x128xf32, #tpu.memory_space<vmem>>, vector<4x128xf32>
    tpu.vector_store %arg10[%c0_23, %c0_24], %29 {strides = array<i32>} : memref<4x128xf32, #tpu.memory_space<vmem>>, vector<4x128xf32>,
    return
  }
  func.func @transform_0(%arg0: i32) -> (i32, i32) {
    %c0_i32 = arith.constant 0 : i32
    %c0_i32_0 = arith.constant 0 : i32
    return %c0_i32, %arg0 : i32, i32
  }
  func.func @transform_1(%arg0: i32) -> (i32, i32) {
    %c0_i32 = arith.constant 0 : i32
    %c0_i32_0 = arith.constant 0 : i32
    %c0_i32_1 = arith.constant 0 : i32
    return %c0_i32, %c0_i32_0 : i32, i32
  }
  func.func @transform_2(%arg0: i32) -> (i32, i32) {
    %c0_i32 = arith.constant 0 : i32
    %c0_i32_0 = arith.constant 0 : i32
    %c0_i32_1 = arith.constant 0 : i32
    return %c0_i32, %c0_i32_0 : i32, i32
  }
  func.func @transform_3(%arg0: i32) -> (i32, i32) {
    %c0_i32 = arith.constant 0 : i32
    %c0_i32_0 = arith.constant 0 : i32
    %c0_i32_1 = arith.constant 0 : i32
    return %c0_i32, %c0_i32_0 : i32, i32
  }
  func.func @transform_4(%arg0: i32) -> (i32, i32) {
    %c0_i32 = arith.constant 0 : i32
    %c0_i32_0 = arith.constant 0 : i32
    %c0_i32_1 = arith.constant 0 : i32
    return %c0_i32, %c0_i32_0 : i32, i32
  }
  func.func @transform_5(%arg0: i32) -> (i32, i32) {
    %c0_i32 = arith.constant 0 : i32
    %c0_i32_0 = arith.constant 0 : i32
    %c0_i32_1 = arith.constant 0 : i32
    return %c0_i32, %c0_i32_0 : i32, i32
  }
  func.func @transform_6(%arg0: i32) -> (i32, i32) {
    %c0_i32 = arith.constant 0 : i32
    %c0_i32_0 = arith.constant 0 : i32
    %c0_i32_1 = arith.constant 0 : i32
    return %c0_i32, %c0_i32_0 : i32, i32
  }
  func.func @transform_7(%arg0: i32) -> (i32, i32) {
    %c0_i32 = arith.constant 0 : i32
    %c0_i32_0 = arith.constant 0 : i32
    %c0_i32_1 = arith.constant 0 : i32
    return %c0_i32, %c0_i32_0 : i32, i32
  }
  func.func @transform_8(%arg0: i32) -> (i32, i32) {
    %c0_i32 = arith.constant 0 : i32
    %c0_i32_0 = arith.constant 0 : i32
    %c0_i32_1 = arith.constant 0 : i32
    return %c0_i32, %c0_i32_0 : i32, i32
  }
  func.func @transform_9(%arg0: i32) -> (i32, i32) {
    %c0_i32 = arith.constant 0 : i32
    %c0_i32_0 = arith.constant 0 : i32
    return %c0_i32, %arg0 : i32, i32
  }
}

</mosaic_0001>

<llo_original>
// kernel: tpu_custom_call.1
$region0: #{tpu_custom_call.1}
  #allocation0 [shape = 'u32[]', space=smem, size = 0x4, offset = 0x4, fixed_abs, tag = 'smem constant byte address 0x4 - core index']
  #allocation1 [shape = 'u32[72,128]{1,0:T(1,128)}', space=vmem, size = 0x9000, scoped, tag = 'internal scratch']
  %s0 = inlined_call_operand.vmem [shape: bf16[32,256], index: 0, kind: input, shape index: {}]
  %s1 = inlined_call_operand.vmem [shape: bf16[32,32], index: 1, kind: input, shape index: {}]
  %s2 = inlined_call_operand.vmem [shape: f32[32,1], index: 2, kind: input, shape index: {}]
  %s3 = inlined_call_operand.vmem [shape: bf16[16,32], index: 3, kind: input, shape index: {}]
  %s4 = inlined_call_operand.vmem [shape: f32[16,1], index: 4, kind: input, shape index: {}]
  %s5 = inlined_call_operand.vmem [shape: bf16[8,16], index: 5, kind: input, shape index: {}]
  %s6 = inlined_call_operand.vmem [shape: f32[8,1], index: 6, kind: input, shape index: {}]
  %s7 = inlined_call_operand.vmem [shape: bf16[4,8], index: 7, kind: input, shape index: {}]
  %s8 = inlined_call_operand.vmem [shape: f32[4,1], index: 8, kind: input, shape index: {}]
  %s9 = inlined_call_operand.hbm [shape: f32[4,256], index: 9, kind: output, shape index: {}]
  %s10 = sld [smem:[#allocation0]]
  $region110: #{tpu_custom_call.1} parent=0
    _
  %s12 = ssub.s32 1, %s10
  %s13 = scalar_select 0, %s12, %s10
  $region1: #{tpu_custom_call.1} parent=0
    #allocation2 [shape = 'u8[16384]{0}', space=vmem, size = 0x4000, scoped, tag = 'input window, operand 0']
    #allocation3 [shape = 'u8[4096]{0}', space=vmem, size = 0x1000, scoped, tag = 'output window, operand 0']
    #allocation4 [shape = 's32[2]{0}', space=sflag, size = 0x8, scoped, tag = 'scoped memory for tpu_custom_call.1']
    %14 = vsyncpa [#allocation4], 0
    %s15 = scalar_lea.sflag [#allocation4], 1
    %16 = vsyncpa %s15, 0
    loop: start=0, step=1, limit=4
    $region2: #{tpu_custom_call.1} parent=1 // loop_pre_header
      _
    $region3: #{tpu_custom_call.1} parent=1 // loop_header
      %s18 = sphi 0, %s22
      %p19 = scmp.ge.s32.totalorder %s18, 4
      %s28 = sphi 0, %s30
      %s31 = sphi 0, %s28
      %s32 = sphi 0, %s31
      %s48 = sphi 0, %s32
      %s52 = sphi 0, %s52
      %s54 = sphi 0, %s52
      %s55 = sphi 0, %s54
      %s69 = sphi 0, %s55
      %s73 = sphi 0, %s73
      %s75 = sphi 0, %s73
      %s76 = sphi 0, %s75
      %s90 = sphi 0, %s76
      %s94 = sphi 0, %s94
      %s96 = sphi 0, %s94
      %s97 = sphi 0, %s96
      %s111 = sphi 0, %s97
      %s115 = sphi 0, %s115
      %s117 = sphi 0, %s115
      %s118 = sphi 0, %s117
      %s132 = sphi 0, %s118
      %s136 = sphi 0, %s136
      %s138 = sphi 0, %s136
      %s139 = sphi 0, %s138
      %s153 = sphi 0, %s139
      %s157 = sphi 0, %s157
      %s159 = sphi 0, %s157
      %s160 = sphi 0, %s159
      %s174 = sphi 0, %s160
      %s178 = sphi 0, %s178
      %s180 = sphi 0, %s178
      %s181 = sphi 0, %s180
      %s195 = sphi 0, %s181
      %s199 = sphi 0, %s199
      %s201 = sphi 0, %s199
      %s202 = sphi 0, %s201
      %s216 = sphi 0, %s202
      %s222 = sphi 0, %s224
      %s225 = sphi 0, %s222
      %s226 = sphi 0, %s225
      %s242 = sphi 0, %s226
    $region4: #{tpu_custom_call.1} parent=1 // loop_header_branch
      %21 = sbr.rel (%p19) target = $region8
    $region5: #{tpu_custom_call.1} parent=1 // loop_body
      %s23 = ssub.s32 %s18, 1
      %s24 = ssub.s32 %s18, 2
      %s25 = sadd.s32 %s18, 1
      %s26 = ssub.s32 %s18, %s25
      %p27 = scmp.eq.s32.totalorder %s26, 0
      %s29 = sadd.s32 %s28, 1
      %s30 = scalar_select %p27, %s28, %s29
      %p33 = pneg %p27
      %p34 = scmp.eq.s32.totalorder %s18, 1
      %p35 = por %p33, %p34
      %p36 = scmp.ne.s32.totalorder %s28, %s31
      %p37 = scmp.eq.s32.totalorder %s18, 0
      %p38 = por %p36, %p37
      %p39 = scmp.ne.s32.totalorder %s28, %s31
      %p40 = scmp.eq.s32.totalorder %s23, 1
      %p41 = por %p39, %p40
      %p42 = scmp.ne.s32.totalorder %s31, %s32
      %p43 = scmp.eq.s32.totalorder %s23, 0
      %p44 = por %p42, %p43
      %p45 = scmp.ne.s32.totalorder %s31, %s32
      %p46 = scmp.eq.s32.totalorder %s24, 1
      %p47 = por %p45, %p46
      %p49 = scmp.ne.s32.totalorder %s32, %s48
      %p50 = scmp.eq.s32.totalorder %s24, 0
      %p51 = por %p49, %p50
      %s53 = sadd.s32 %s52, 1
      %p56 = scmp.eq.s32.totalorder %s18, 1
      %p57 = scmp.ne.s32.totalorder %s52, %s54
      %p58 = scmp.eq.s32.totalorder %s18, 0
      %p59 = por %p57, %p58
      %p60 = scmp.ne.s32.totalorder %s52, %s54
      %p61 = scmp.eq.s32.totalorder %s23, 1
      %p62 = por %p60, %p61
      %p63 = scmp.ne.s32.totalorder %s54, %s55
      %p64 = scmp.eq.s32.totalorder %s23, 0
      %p65 = por %p63, %p64
      %p66 = scmp.ne.s32.totalorder %s54, %s55
      %p67 = scmp.eq.s32.totalorder %s24, 1
      %p68 = por %p66, %p67
      %p70 = scmp.ne.s32.totalorder %s55, %s69
      %p71 = scmp.eq.s32.totalorder %s24, 0
      %p72 = por %p70, %p71
      %s74 = sadd.s32 %s73, 1
      %p77 = scmp.eq.s32.totalorder %s18, 1
      %p78 = scmp.ne.s32.totalorder %s73, %s75
      %p79 = scmp.eq.s32.totalorder %s18, 0
      %p80 = por %p78, %p79
      %p81 = scmp.ne.s32.totalorder %s73, %s75
      %p82 = scmp.eq.s32.totalorder %s23, 1
      %p83 = por %p81, %p82
      %p84 = scmp.ne.s32.totalorder %s75, %s76
      %p85 = scmp.eq.s32.totalorder %s23, 0
      %p86 = por %p84, %p85
      %p87 = scmp.ne.s32.totalorder %s75, %s76
      %p88 = scmp.eq.s32.totalorder %s24, 1
      %p89 = por %p87, %p88
      %p91 = scmp.ne.s32.totalorder %s76, %s90
      %p92 = scmp.eq.s32.totalorder %s24, 0
      %p93 = por %p91, %p92
      %s95 = sadd.s32 %s94, 1
      %p98 = scmp.eq.s32.totalorder %s18, 1
      %p99 = scmp.ne.s32.totalorder %s94, %s96
      %p100 = scmp.eq.s32.totalorder %s18, 0
      %p101 = por %p99, %p100
      %p102 = scmp.ne.s32.totalorder %s94, %s96
      %p103 = scmp.eq.s32.totalorder %s23, 1
      %p104 = por %p102, %p103
      %p105 = scmp.ne.s32.totalorder %s96, %s97
      %p106 = scmp.eq.s32.totalorder %s23, 0
      %p107 = por %p105, %p106
      %p108 = scmp.ne.s32.totalorder %s96, %s97
      %p109 = scmp.eq.s32.totalorder %s24, 1
      %p110 = por %p108, %p109
      %p112 = scmp.ne.s32.totalorder %s97, %s111
      %p113 = scmp.eq.s32.totalorder %s24, 0
      %p114 = por %p112, %p113
      %s116 = sadd.s32 %s115, 1
      %p119 = scmp.eq.s32.totalorder %s18, 1
      %p120 = scmp.ne.s32.totalorder %s115, %s117
      %p121 = scmp.eq.s32.totalorder %s18, 0
      %p122 = por %p120, %p121
      %p123 = scmp.ne.s32.totalorder %s115, %s117
      %p124 = scmp.eq.s32.totalorder %s23, 1
      %p125 = por %p123, %p124
      %p126 = scmp.ne.s32.totalorder %s117, %s118
      %p127 = scmp.eq.s32.totalorder %s23, 0
      %p128 = por %p126, %p127
      %p129 = scmp.ne.s32.totalorder %s117, %s118
      %p130 = scmp.eq.s32.totalorder %s24, 1
      %p131 = por %p129, %p130
      %p133 = scmp.ne.s32.totalorder %s118, %s132
      %p134 = scmp.eq.s32.totalorder %s24, 0
      %p135 = por %p133, %p134
      %s137 = sadd.s32 %s136, 1
      %p140 = scmp.eq.s32.totalorder %s18, 1
      %p141 = scmp.ne.s32.totalorder %s136, %s138
      %p142 = scmp.eq.s32.totalorder %s18, 0
      %p143 = por %p141, %p142
      %p144 = scmp.ne.s32.totalorder %s136, %s138
      %p145 = scmp.eq.s32.totalorder %s23, 1
      %p146 = por %p144, %p145
      %p147 = scmp.ne.s32.totalorder %s138, %s139
      %p148 = scmp.eq.s32.totalorder %s23, 0
      %p149 = por %p147, %p148
      %p150 = scmp.ne.s32.totalorder %s138, %s139
      %p151 = scmp.eq.s32.totalorder %s24, 1
      %p152 = por %p150, %p151
      %p154 = scmp.ne.s32.totalorder %s139, %s153
      %p155 = scmp.eq.s32.totalorder %s24, 0
      %p156 = por %p154, %p155
      %s158 = sadd.s32 %s157, 1
      %p161 = scmp.eq.s32.totalorder %s18, 1
      %p162 = scmp.ne.s32.totalorder %s157, %s159
      %p163 = scmp.eq.s32.totalorder %s18, 0
      %p164 = por %p162, %p163
      %p165 = scmp.ne.s32.totalorder %s157, %s159
      %p166 = scmp.eq.s32.totalorder %s23, 1
      %p167 = por %p165, %p166
      %p168 = scmp.ne.s32.totalorder %s159, %s160
      %p169 = scmp.eq.s32.totalorder %s23, 0
      %p170 = por %p168, %p169
      %p171 = scmp.ne.s32.totalorder %s159, %s160
      %p172 = scmp.eq.s32.totalorder %s24, 1
      %p173 = por %p171, %p172
      %p175 = scmp.ne.s32.totalorder %s160, %s174
      %p176 = scmp.eq.s32.totalorder %s24, 0
      %p177 = por %p175, %p176
      %s179 = sadd.s32 %s178, 1
      %p182 = scmp.eq.s32.totalorder %s18, 1
      %p183 = scmp.ne.s32.totalorder %s178, %s180
      %p184 = scmp.eq.s32.totalorder %s18, 0
      %p185 = por %p183, %p184
      %p186 = scmp.ne.s32.totalorder %s178, %s180
      %p187 = scmp.eq.s32.totalorder %s23, 1
      %p188 = por %p186, %p187
      %p189 = scmp.ne.s32.totalorder %s180, %s181
      %p190 = scmp.eq.s32.totalorder %s23, 0
      %p191 = por %p189, %p190
      %p192 = scmp.ne.s32.totalorder %s180, %s181
      %p193 = scmp.eq.s32.totalorder %s24, 1
      %p194 = por %p192, %p193
      %p196 = scmp.ne.s32.totalorder %s181, %s195
      %p197 = scmp.eq.s32.totalorder %s24, 0
      %p198 = por %p196, %p197
      %s200 = sadd.s32 %s199, 1
      %p203 = scmp.eq.s32.totalorder %s18, 1
      %p204 = scmp.ne.s32.totalorder %s199, %s201
      %p205 = scmp.eq.s32.totalorder %s18, 0
      %p206 = por %p204, %p205
      %p207 = scmp.ne.s32.totalorder %s199, %s201
      %p208 = scmp.eq.s32.totalorder %s23, 1
      %p209 = por %p207, %p208
      %p210 = scmp.ne.s32.totalorder %s201, %s202
      %p211 = scmp.eq.s32.totalorder %s23, 0
      %p212 = por %p210, %p211
      %p213 = scmp.ne.s32.totalorder %s201, %s202
      %p214 = scmp.eq.s32.totalorder %s24, 1
      %p215 = por %p213, %p214
      %p217 = scmp.ne.s32.totalorder %s202, %s216
      %p218 = scmp.eq.s32.totalorder %s24, 0
      %p219 = por %p217, %p218
      %s220 = ssub.s32 %s18, %s25
      %p221 = scmp.eq.s32.totalorder %s220, 0
      %s223 = sadd.s32 %s222, 1
      %s224 = scalar_select %p221, %s222, %s223
      %p227 = pneg %p221
      %p228 = scmp.eq.s32.totalorder %s18, 1
      %p229 = por %p227, %p228
      %p230 = scmp.ne.s32.totalorder %s222, %s225
      %p231 = scmp.eq.s32.totalorder %s18, 0
      %p232 = por %p230, %p231
      %p233 = scmp.ne.s32.totalorder %s222, %s225
      %p234 = scmp.eq.s32.totalorder %s23, 1
      %p235 = por %p233, %p234
      %p236 = scmp.ne.s32.totalorder %s225, %s226
      %p237 = scmp.eq.s32.totalorder %s23, 0
      %p238 = por %p236, %p237
      %p239 = scmp.ne.s32.totalorder %s225, %s226
      %p240 = scmp.eq.s32.totalorder %s24, 1
      %p241 = por %p239, %p240
      %p243 = scmp.ne.s32.totalorder %s226, %s242
      %p244 = scmp.eq.s32.totalorder %s24, 0
      %p245 = por %p243, %p244
      %p246 = scmp.le.s32.totalorder 1, %s18
      %p247 = scmp.lt.s32.totalorder %s18, 3
      %p248 = pnand %p246, %p247
      %p249 = pneg %p248
      // Predicated region
      $region9: #{tpu_custom_call.1} parent=5 // pred_check
        _
      $region10: #{tpu_custom_call.1} parent=5 // pred_check_branch
        %251 = sbr.rel (%p248) target = $region12
      $region11: #{tpu_custom_call.1} parent=5 // pred_region
        %s252 = ssub.s32 %s18, 1
        // Predicated region
        $region13: #{tpu_custom_call.1} parent=11 // pred_check
          %p253 = pneg %p65
        $region14: #{tpu_custom_call.1} parent=11 // pred_check_branch
          %255 = sbr.rel (%p253) target = $region16
        $region15: #{tpu_custom_call.1} parent=11 // pred_region
          _
        $region16: #{tpu_custom_call.1} parent=11 // pred_fallthru
          _
        // Predicated region
        $region17: #{tpu_custom_call.1} parent=11 // pred_check
          %p256 = pneg %p86
        $region18: #{tpu_custom_call.1} parent=11 // pred_check_branch
          %258 = sbr.rel (%p256) target = $region20
        $region19: #{tpu_custom_call.1} parent=11 // pred_region
          _
        $region20: #{tpu_custom_call.1} parent=11 // pred_fallthru
          _
        // Predicated region
        $region21: #{tpu_custom_call.1} parent=11 // pred_check
          %p259 = pneg %p107
        $region22: #{tpu_custom_call.1} parent=11 // pred_check_branch
          %261 = sbr.rel (%p259) target = $region24
        $region23: #{tpu_custom_call.1} parent=11 // pred_region
          _
        $region24: #{tpu_custom_call.1} parent=11 // pred_fallthru
          _
        // Predicated region
        $region25: #{tpu_custom_call.1} parent=11 // pred_check
          %p262 = pneg %p128
        $region26: #{tpu_custom_call.1} parent=11 // pred_check_branch
          %264 = sbr.rel (%p262) target = $region28
        $region27: #{tpu_custom_call.1} parent=11 // pred_region
          _
        $region28: #{tpu_custom_call.1} parent=11 // pred_fallthru
          _
        // Predicated region
        $region29: #{tpu_custom_call.1} parent=11 // pred_check
          %p265 = pneg %p149
        $region30: #{tpu_custom_call.1} parent=11 // pred_check_branch
          %267 = sbr.rel (%p265) target = $region32
        $region31: #{tpu_custom_call.1} parent=11 // pred_region
          _
        $region32: #{tpu_custom_call.1} parent=11 // pred_fallthru
          _
        // Predicated region
        $region33: #{tpu_custom_call.1} parent=11 // pred_check
          %p268 = pneg %p170
        $region34: #{tpu_custom_call.1} parent=11 // pred_check_branch
          %270 = sbr.rel (%p268) target = $region36
        $region35: #{tpu_custom_call.1} parent=11 // pred_region
          _
        $region36: #{tpu_custom_call.1} parent=11 // pred_fallthru
          _
        // Predicated region
        $region37: #{tpu_custom_call.1} parent=11 // pred_check
          %p271 = pneg %p191
        $region38: #{tpu_custom_call.1} parent=11 // pred_check_branch
          %273 = sbr.rel (%p271) target = $region40
        $region39: #{tpu_custom_call.1} parent=11 // pred_region
          _
        $region40: #{tpu_custom_call.1} parent=11 // pred_fallthru
          _
        // Predicated region
        $region41: #{tpu_custom_call.1} parent=11 // pred_check
          %p274 = pneg %p212
        $region42: #{tpu_custom_call.1} parent=11 // pred_check_branch
          %276 = sbr.rel (%p274) target = $region44
        $region43: #{tpu_custom_call.1} parent=11 // pred_region
          _
        $region44: #{tpu_custom_call.1} parent=11 // pred_fallthru
          _
      $region12: #{tpu_custom_call.1} parent=5 // pred_fallthru
        _
      %p277 = scmp.lt.s32.totalorder %s18, 2
      // Predicated region
      $region45: #{tpu_custom_call.1} parent=5 // pred_check
        %p278 = pneg %p277
      $region46: #{tpu_custom_call.1} parent=5 // pred_check_branch
        %280 = sbr.rel (%p278) target = $region48
      $region47: #{tpu_custom_call.1} parent=5 // pred_region
        // Predicated region
        $region49: #{tpu_custom_call.1} parent=47 // pred_check
          %p281 = pneg %p38
        $region50: #{tpu_custom_call.1} parent=47 // pred_check_branch
          %283 = sbr.rel (%p281) target = $region52
        $region51: #{tpu_custom_call.1} parent=47 // pred_region
          %s284 = sand.u32 %s28, 1
          %s285 = sand.u32 %s28, 1
          %s286 = smul.addr %s285, 16
          %s287 = scalar_lea.vmem [#allocation2], %s286
          %s288 = smul.addr %s18, 4
          %s289 = scalar_lea.vmem %s0, %s288
          // Predicated region
          $region53: #{tpu_custom_call.1} parent=51 // pred_check
            _
          $region54: #{tpu_custom_call.1} parent=51 // pred_check_branch
            %291 = sbr.rel (0) target = $region56
          $region55: #{tpu_custom_call.1} parent=51 // pred_region
            // Predicated region
            $region57: #{tpu_custom_call.1} parent=55 // pred_check
              _
            $region58: #{tpu_custom_call.1} parent=55 // pred_check_branch
              %293 = sbr.rel target = $region60
            $region59: #{tpu_custom_call.1} parent=55 // pred_region
              // Predicated region
              $region72: #{tpu_custom_call.1} parent=59 // pred_check
                _
              $region73: #{tpu_custom_call.1} parent=59 // pred_check_branch
                %315 = sbr.rel (0) target = $region75
              $region74: #{tpu_custom_call.1} parent=59 // pred_region
                loop: start=0, step=1, limit=1
                $region76: #{tpu_custom_call.1} parent=74 // loop_pre_header
                  _
                $region77: #{tpu_custom_call.1} parent=74 // loop_header
                  %s317 = sphi 0, %s321
                  %p318 = scmp.ge.s32.totalorder %s317, 1
                  %s322 = sphi %s289, %s289
                  %s323 = sphi %s287, %s287
                $region78: #{tpu_custom_call.1} parent=74 // loop_header_branch
                  %320 = sbr.rel (%p318) target = $region82
                $region79: #{tpu_custom_call.1} parent=74 // loop_body
                  _
                $region80: #{tpu_custom_call.1} parent=74 // loop_footer
                  %s321 = sadd.s32 1, %s317
                $region81: #{tpu_custom_call.1} parent=74 // loop_footer_branch
                  %316 = sbr.rel target = $region77
                $region82: #{tpu_custom_call.1} parent=74 // loop_exit
                  _
                %s325 = ssub.s32 16, 1
                loop: start=0, step=1, limit=1
                $region83: #{tpu_custom_call.1} parent=74 // loop_pre_header
                  _
                $region84: #{tpu_custom_call.1} parent=74 // loop_header
                  %s327 = sphi 0, %s331
                  %p328 = scmp.ge.s32.totalorder %s327, 1
                  %s332 = sphi %s289, %s289
                  %s333 = sphi %s287, %s287
                $region85: #{tpu_custom_call.1} parent=74 // loop_header_branch
                  %330 = sbr.rel (%p328) target = $region89
                $region86: #{tpu_custom_call.1} parent=74 // loop_body
                  %v334 = vld [vmem:[%s332] sm:%s325]
                  %335 = vst [vmem:[%s333] sm:%s325] %v334
                  %v336 = vld [vmem:[%s332 + $0x8] sm:%s325]
                  %337 = vst [vmem:[%s333 + $0x4] sm:%s325] %v336
                  %v338 = vld [vmem:[%s332 + $0x10] sm:%s325]
                  %339 = vst [vmem:[%s333 + $0x8] sm:%s325] %v338
                  %v340 = vld [vmem:[%s332 + $0x18] sm:%s325]
                  %341 = vst [vmem:[%s333 + $0xc] sm:%s325] %v340
                $region87: #{tpu_custom_call.1} parent=74 // loop_footer
                  %s331 = sadd.s32 1, %s327
                $region88: #{tpu_custom_call.1} parent=74 // loop_footer_branch
                  %326 = sbr.rel target = $region84
                $region89: #{tpu_custom_call.1} parent=74 // loop_exit
                  _
              $region75: #{tpu_custom_call.1} parent=59 // pred_fallthru
                _
            $region60: #{tpu_custom_call.1} parent=55 // pred_fallthru
              _
            // Predicated region
            $region61: #{tpu_custom_call.1} parent=55 // pred_check
              _
            $region62: #{tpu_custom_call.1} parent=55 // pred_check_branch
              %295 = sbr.rel (0) target = $region64
            $region63: #{tpu_custom_call.1} parent=55 // pred_region
              %s297 = ssub.s32 16, 1
              loop: start=0, step=1, limit=1
              $region65: #{tpu_custom_call.1} parent=63 // loop_pre_header
                _
              $region66: #{tpu_custom_call.1} parent=63 // loop_header
                %s299 = sphi 0, %s303
                %p300 = scmp.ge.s32.totalorder %s299, 1
                %s304 = sphi %s289, %s289
                %s305 = sphi %s287, %s287
              $region67: #{tpu_custom_call.1} parent=63 // loop_header_branch
                %302 = sbr.rel (%p300) target = $region71
              $region68: #{tpu_custom_call.1} parent=63 // loop_body
                %v306 = vld [vmem:[%s304] sm:%s297]
                %307 = vst [vmem:[%s305] sm:%s297] %v306
                %v308 = vld [vmem:[%s304 + $0x8] sm:%s297]
                %309 = vst [vmem:[%s305 + $0x4] sm:%s297] %v308
                %v310 = vld [vmem:[%s304 + $0x10] sm:%s297]
                %311 = vst [vmem:[%s305 + $0x8] sm:%s297] %v310
                %v312 = vld [vmem:[%s304 + $0x18] sm:%s297]
                %313 = vst [vmem:[%s305 + $0xc] sm:%s297] %v312
              $region69: #{tpu_custom_call.1} parent=63 // loop_footer
                %s303 = sadd.s32 1, %s299
              $region70: #{tpu_custom_call.1} parent=63 // loop_footer_branch
                %298 = sbr.rel target = $region66
              $region71: #{tpu_custom_call.1} parent=63 // loop_exit
                _
            $region64: #{tpu_custom_call.1} parent=55 // pred_fallthru
              _
          $region56: #{tpu_custom_call.1} parent=51 // pred_fallthru
            _
          %342 = vnop
        $region52: #{tpu_custom_call.1} parent=47 // pred_fallthru
          _
      $region48: #{tpu_custom_call.1} parent=5 // pred_fallthru
        _
      %p343 = scmp.le.s32.totalorder 1, %s18
      %p344 = scmp.lt.s32.totalorder %s18, 3
      %p345 = pnand %p343, %p344
      %p346 = pneg %p345
      // Predicated region
      $region90: #{tpu_custom_call.1} parent=5 // pred_check
        _
      $region91: #{tpu_custom_call.1} parent=5 // pred_check_branch
        %348 = sbr.rel (%p345) target = $region93
      $region92: #{tpu_custom_call.1} parent=5 // pred_region
        %s349 = ssub.s32 %s18, 1
        %s350 = sand.u32 %s31, 1
        %s351 = sand.u32 %s31, 1
        %s352 = smul.addr %s351, 16
        %s353 = scalar_lea.vmem [#allocation2], %s352
        // Predicated region
        $region94: #{tpu_custom_call.1} parent=92 // pred_check
          %p354 = pneg %p44
        $region95: #{tpu_custom_call.1} parent=92 // pred_check_branch
          %356 = sbr.rel (%p354) target = $region97
        $region96: #{tpu_custom_call.1} parent=92 // pred_region
          _
        $region97: #{tpu_custom_call.1} parent=92 // pred_fallthru
          _
        %s357 = sand.u32 %s31, 1
        %s358 = sand.u32 %s31, 1
        %s359 = smul.addr %s358, 16
        %s360 = scalar_lea.vmem [#allocation2], %s359
        %p361 = pneg %p44
        %p362 = pneg %p41
        %p363 = pneg %p65
        %p364 = pneg %p62
        %p365 = pneg %p86
        %p366 = pneg %p83
        %p367 = pneg %p107
        %p368 = pneg %p104
        %p369 = pneg %p128
        %p370 = pneg %p125
        %p371 = pneg %p149
        %p372 = pneg %p146
        %p373 = pneg %p170
        %p374 = pneg %p167
        %p375 = pneg %p191
        %p376 = pneg %p188
        %p377 = pneg %p212
        %p378 = pneg %p209
        %p379 = pneg %p238
        %p380 = pneg %p235
        %s381 = sand.u32 %s225, 1
        %s382 = scalar_lea.sflag [#allocation4], %s381
        %s383 = sand.u32 %s225, 1
        %s384 = smul.addr %s383, 4
        %s385 = scalar_lea.vmem [#allocation3], %s384
        %v387 = vld [vmem:[%s353] sm:$0xf]
        %v388 = vld [vmem:[%s353 + $0x4] sm:$0xf]
        %v389 = vld [vmem:[%s353 + $0x8] sm:$0xf]
        %v390 = vld [vmem:[%s353 + $0xc] sm:$0xf]
        %v391 = vld [vmem:[%s1] sm:$0xf]
        %v392 = vld [vmem:[%s1 + $0x4] sm:$0xf]
        %v393 = vld [vmem:[%s1 + $0x8] sm:$0xf]
        %v394 = vld [vmem:[%s1 + $0xc] sm:$0xf]
        %v395 = vld [vmem:[%s2] sm:$0xff]
        %v396 = vld [vmem:[%s2 + $0x8] sm:$0xff]
        %v397 = vld [vmem:[%s2 + $0x10] sm:$0xff]
        %v398 = vld [vmem:[%s2 + $0x18] sm:$0xff]
        %400 = vset.pattern.permute.xlu0 0
        %401 = vperm.xlu0 %400, %v395
        %v402 = vpop.permute.xlu0 %401
        %405 = vset.pattern.permute.xlu0 0
        %406 = vperm.xlu0 %405, %v396
        %v407 = vpop.permute.xlu0 %406
        %410 = vset.pattern.permute.xlu0 0
        %411 = vperm.xlu0 %410, %v397
        %v412 = vpop.permute.xlu0 %411
        %415 = vset.pattern.permute.xlu0 0
        %416 = vperm.xlu0 %415, %v398
        %v417 = vpop.permute.xlu0 %416
        %v423 = vunpack.c.l.b16 %v391
        %v424 = vunpack.c.l.b16 %v392
        %v425 = vunpack.c.l.b16 %v393
        %v426 = vunpack.c.l.b16 %v394
        %v427 = vpack.c.b16 %v424, %v423
        %v428 = vpack.c.b16 %v426, %v425
        %v433 = vunpack.c.l.b16 %v387
        %v434 = vunpack.c.l.b16 %v388
        %v435 = vunpack.c.l.b16 %v389
        %v436 = vunpack.c.l.b16 %v390
        %v437 = vpack.c.b16 %v434, %v433
        %v438 = vpack.c.b16 %v436, %v435
        %vm441 = vcmask 261120
        %v443 = vsel %vm441, %v427, 0
        %v446 = vsel %vm441, %v428, 0
        %448 = vmatpush.bf16.msra.mxu0 0
        %449 = vmatpush.bf16.msra.mxu0 0
        %450 = vmatpush.bf16.msra.mxu0 0
        %451 = vmatpush.bf16.msra.mxu0 0
        %452 = vmatpush.bf16.msra.mxu0 0
        %453 = vmatpush.bf16.msra.mxu0 0
        %454 = vmatpush.bf16.msra.mxu0 %v438
        %455 = vmatpush.bf16.msra.mxu0 %v437
        %456 = vmatmul.bf16.gmra.mxu0 %v443
        %v457 = vpop.f32.mrf.mxu0
        %v458 = vadd.f32 %v402, %v457
        %v459 = vpop.f32.mrf.mxu0
        %v460 = vadd.f32 %v407, %v459
        %461 = vmatmul.bf16.gmra.mxu0 %v446
        %v462 = vpop.f32.mrf.mxu0
        %v463 = vadd.f32 %v412, %v462
        %v464 = vpop.f32.mrf.mxu0
        %v465 = vadd.f32 %v417, %v464
        %466 = vdwg.mxu0
        %v467 = vmax.f32 %v458, 0.0
        %v468 = vmax.f32 %v460, 0.0
        %v469 = vmax.f32 %v463, 0.0
        %v470 = vmax.f32 %v465, 0.0
        %v471 = vpack.c.bf16 %v468, %v467
        %v472 = vpack.c.bf16 %v470, %v469
        %v473 = vld [vmem:[%s3] sm:$0xf]
        %v474 = vld [vmem:[%s3 + $0x4] sm:$0xf]
        %v475 = vld [vmem:[%s4] sm:$0xff]
        %v476 = vld [vmem:[%s4 + $0x8] sm:$0xff]
        %478 = vset.pattern.permute.xlu0 0
        %479 = vperm.xlu0 %478, %v475
        %v480 = vpop.permute.xlu0 %479
        %483 = vset.pattern.permute.xlu0 0
        %484 = vperm.xlu0 %483, %v476
        %v485 = vpop.permute.xlu0 %484
        %v489 = vunpack.c.l.b16 %v473
        %v490 = vunpack.c.l.b16 %v474
        %v491 = vpack.c.b16 %v490, %v489
        %v493 = vsel %vm441, %v491, 0
        %495 = vmatpush.bf16.msra.mxu0 0
        %496 = vmatpush.bf16.msra.mxu0 0
        %497 = vmatpush.bf16.msra.mxu0 0
        %498 = vmatpush.bf16.msra.mxu0 0
        %499 = vmatpush.bf16.msra.mxu0 0
        %500 = vmatpush.bf16.msra.mxu0 0
        %501 = vmatpush.bf16.msra.mxu0 %v472
        %502 = vmatpush.bf16.msra.mxu0 %v471
        %503 = vmatmul.bf16.gmra.mxu0 %v493
        %v504 = vpop.f32.mrf.mxu0
        %v505 = vadd.f32 %v480, %v504
        %v506 = vpop.f32.mrf.mxu0
        %v507 = vadd.f32 %v485, %v506
        %508 = vdwg.mxu0
        %v509 = vmax.f32 %v505, 0.0
        %v510 = vmax.f32 %v507, 0.0
        %v511 = vpack.c.bf16 %v510, %v509
        %v512 = vld [vmem:[%s5] sm:$0xf]
        %v513 = vld [vmem:[%s6] sm:$0xff]
        %515 = vset.pattern.permute.xlu0 0
        %516 = vperm.xlu0 %515, %v513
        %v517 = vpop.permute.xlu0 %516
        %vm519 = vcmask 130048
        %v521 = vsel %vm519, %v512, 0
        %523 = vmatpush.bf16.msra.mxu0 0
        %524 = vmatpush.bf16.msra.mxu0 0
        %525 = vmatpush.bf16.msra.mxu0 0
        %526 = vmatpush.bf16.msra.mxu0 0
        %527 = vmatpush.bf16.msra.mxu0 0
        %528 = vmatpush.bf16.msra.mxu0 0
        %529 = vmatpush.bf16.msra.mxu0 0
        %530 = vmatpush.bf16.msra.mxu0 %v511
        %531 = vmatmul.bf16.gmra.mxu0 %v521
        %v532 = vpop.f32.mrf.mxu0
        %v533 = vadd.f32 %v517, %v532
        %v534 = vpop.f32.mrf.mxu0
        %535 = vdwg.mxu0
        %v536 = vmax.f32 %v533, 0.0
        %v537 = vpack.c.bf16 %v536, %v536
        %v538 = vld [vmem:[%s7] sm:$0x3]
        %v539 = vld [vmem:[%s8] sm:$0xf]
        %541 = vset.pattern.permute.xlu0 0
        %542 = vperm.xlu0 %541, %v539
        %v543 = vpop.permute.xlu0 %542
        %vm545 = vcmask 64512
        %v547 = vsel %vm545, %v538, 0
        %vm549 = vcmask 1043456
        %v551 = vsel %vm549, %v537, 0
        %553 = vmatpush.bf16.msra.mxu0 0
        %554 = vmatpush.bf16.msra.mxu0 0
        %555 = vmatpush.bf16.msra.mxu0 0
        %556 = vmatpush.bf16.msra.mxu0 0
        %557 = vmatpush.bf16.msra.mxu0 0
        %558 = vmatpush.bf16.msra.mxu0 0
        %559 = vmatpush.bf16.msra.mxu0 0
        %560 = vmatpush.bf16.msra.mxu0 %v551
        %561 = vmatmul.bf16.gmra.mxu0 %v547
        %v562 = vpop.f32.mrf.mxu0
        %v563 = vadd.f32 %v543, %v562
        %v564 = vpop.f32.mrf.mxu0
        %565 = vdwg.mxu0
        %566 = vst [vmem:[%s385] sm:$0xf] %v563
        %s567 = sand.u32 %s225, 1
        %s568 = scalar_lea.sflag [#allocation4], %s567
        %s569 = sand.u32 %s225, 1
        %s570 = smul.addr %s569, 4
        %s571 = scalar_lea.vmem [#allocation3], %s570
        // Predicated region
        $region98: #{tpu_custom_call.1} parent=92 // pred_check
          %p572 = pneg %p235
        $region99: #{tpu_custom_call.1} parent=92 // pred_check_branch
          %574 = sbr.rel (%p572) target = $region101
        $region100: #{tpu_custom_call.1} parent=92 // pred_region
          %576 = vsyncadd %s568, 0
          %s577 = smul.addr %s23, 4
          %s578 = scalar_lea.hbm %s9, %s577
          %s580 = sshll.u32 %s571, 4
          %s581 = int_to_ptr.vmem [resolvable:$true] %s580
          %s582 = sshll.u32 %s578, 4
          %s583 = int_to_ptr.hbm [resolvable:$true] %s582
          %585 = dma.vmem_to_hbm [thread:$0]  %s581, 64, %s583, %s568
        $region101: #{tpu_custom_call.1} parent=92 // pred_fallthru
          _
      $region93: #{tpu_custom_call.1} parent=5 // pred_fallthru
        _
      %p586 = scmp.le.s32.totalorder 2, %s18
      // Predicated region
      $region102: #{tpu_custom_call.1} parent=5 // pred_check
        %p587 = pneg %p586
      $region103: #{tpu_custom_call.1} parent=5 // pred_check_branch
        %589 = sbr.rel (%p587) target = $region105
      $region104: #{tpu_custom_call.1} parent=5 // pred_region
        %s590 = ssub.s32 %s18, 2
        // Predicated region
        $region106: #{tpu_custom_call.1} parent=104 // pred_check
          %p591 = pneg %p241
        $region107: #{tpu_custom_call.1} parent=104 // pred_check_branch
          %593 = sbr.rel (%p591) target = $region109
        $region108: #{tpu_custom_call.1} parent=104 // pred_region
          %s594 = sand.u32 %s226, 1
          %s595 = scalar_lea.sflag [#allocation4], %s594
          %s596 = sand.u32 %s226, 1
          %s597 = smul.addr %s596, 4
          %s598 = scalar_lea.vmem [#allocation3], %s597
          %600 = dma.done %s595, 64
        $region109: #{tpu_custom_call.1} parent=104 // pred_fallthru
          _
      $region105: #{tpu_custom_call.1} parent=5 // pred_fallthru
        _
    $region6: #{tpu_custom_call.1} parent=1 // loop_footer
      %s22 = sadd.s32 1, %s18
    $region7: #{tpu_custom_call.1} parent=1 // loop_footer_branch
      %17 = sbr.rel target = $region3
    $region8: #{tpu_custom_call.1} parent=1 // loop_exit
      _
    %601 = vsyncpa [#allocation4], 1
    %s602 = scalar_lea.sflag [#allocation4], 1
    %603 = vsyncpa %s602, 1

</llo_original>
